<compile_context>
chip_gen: v6e
topology: v6e:2x2x1
jax: 0.10.0
libtpu: 0.0.40
codegen_flags: <defaults>
</compile_context>

<pallas_src>
import functools
import math

import jax
import jax.numpy as jnp
from jax.experimental import pallas as pl
from jax.experimental.pallas import tpu as pltpu


def _noise_embed_kernel(noise_ref, scale_ref, phase_ref, w1_ref, b1_ref,
                        w2_ref, b2_ref, out_ref, *, matmul_dtype):
    # noise_ref: (tr, P) packed rows.  scale_ref: (P, W) block-diag freqs, so
    # args[:, p*D:(p+1)*D] = noise[:, p] * freqs_dup; phase adds 0 / pi/2.
    args = jnp.dot(noise_ref[...], scale_ref[...],
                   preferred_element_type=jnp.float32) + phase_ref[...]
    emb = jnp.sin(args)                      # sin(x + pi/2) == cos(x): one EUP op

    # proj[0]: Linear(D, D) (block-diagonal over the P packed rows)
    h = jnp.dot(emb.astype(matmul_dtype), w1_ref[...].astype(matmul_dtype),
                preferred_element_type=jnp.float32) + b1_ref[...]

    # proj[1]: nn.GELU() -- exact (erf-based), matching the PyTorch default
    h = 0.5 * h * (1.0 + jax.lax.erf(h * (1.0 / math.sqrt(2.0))))

    # proj[2]: Linear(D, D)
    out = jnp.dot(h.astype(matmul_dtype), w2_ref[...].astype(matmul_dtype),
                  preferred_element_type=jnp.float32) + b2_ref[...]
    out_ref[...] = out.astype(out_ref.dtype)


def sinusoidal_noise_embedding(noise_level, freqs, w1, b1, w2, b2, *,
                               pack_lanes=128, tile_rows=2048,
                               bf16_matmul=False):
    """noise_level: (B, 1) or (B,) f32.  freqs: (D/2,).  w1, w2: (D, D) stored
    (in, out) (transpose of PyTorch Linear weight).  b1, b2: (D,)."""
    x = noise_level.astype(jnp.float32).reshape(-1, 1)
    B = x.shape[0]
    D = w1.shape[0]
    half = freqs.shape[0]
    assert 2 * half == D, (half, D)

    # Lane-packing factor: P batch rows share one `pack_lanes`-wide lane group.
    # (pack_lanes=256 would fully fill v6e/v7x's 256-wide MXU; 128 is the
    # safe all-generation default.)
    P = pack_lanes // D if (D < pack_lanes and pack_lanes % D == 0) else 1
    W = P * D

    # ---- parameters prepared once in the wrapper (no per-step rebroadcast) ----
    mm_dtype = jnp.bfloat16 if bf16_matmul else jnp.float32
    freqs_d = jnp.concatenate([freqs, freqs]).astype(jnp.float32)            # (D,)
    phase_d = jnp.concatenate([jnp.zeros((half,), jnp.float32),
                               jnp.full((half,), math.pi / 2, jnp.float32)]) # (D,)
    eye_p = jnp.eye(P, dtype=jnp.float32)
    scale = jnp.kron(eye_p, freqs_d.reshape(1, D))                           # (P, W)
    phase = jnp.tile(phase_d, P).reshape(1, W)                               # (1, W)
    b1_w = jnp.tile(b1.astype(jnp.float32), P).reshape(1, W)
    b2_w = jnp.tile(b2.astype(jnp.float32), P).reshape(1, W)
    w1_bd = jnp.kron(eye_p, w1.astype(jnp.float32)).astype(mm_dtype)         # (W, W)
    w2_bd = jnp.kron(eye_p, w2.astype(jnp.float32)).astype(mm_dtype)

    # ---- pack rows: (B, 1) -> (R, P); pad B up to a multiple of P ----
    B_pad = -(-B // P) * P
    if B_pad != B:
        x = jnp.pad(x, ((0, B_pad - B), (0, 0)))
    R = B_pad // P
    xp = x.reshape(R, P)

    # ---- packed-row tiling ----
    if R <= 512:
        tr, R_pad = R, R                                    # single full block
    else:
        # >= 2 grid steps so v7x's two TensorCores both get work; 256-aligned
        # tiles, capped at `tile_rows` packed rows (fits VMEM on all gens).
        tr = min(tile_rows, -(-((R + 1) // 2) // 256) * 256)
        R_pad = -(-R // tr) * tr
        if R_pad != R:
            xp = jnp.pad(xp, ((0, R_pad - R), (0, 0)))
    grid = (R_pad // tr,)

    kernel = functools.partial(_noise_embed_kernel, matmul_dtype=mm_dtype)
    const = lambda i: (0, 0)

    out = pl.pallas_call(
        kernel,
        out_shape=jax.ShapeDtypeStruct((R_pad, W), jnp.float32),
        grid=grid,
        in_specs=[
            pl.BlockSpec((tr, P), lambda i: (i, 0)),   # packed noise rows (tiled)
            pl.BlockSpec((P, W), const),               # block-diag freqs (resident)
            pl.BlockSpec((1, W), const),               # phase (0 / pi/2)
            pl.BlockSpec((W, W), const),               # W1 (block-diag)
            pl.BlockSpec((1, W), const),               # b1
            pl.BlockSpec((W, W), const),               # W2 (block-diag)
            pl.BlockSpec((1, W), const),               # b2
        ],
        out_specs=pl.BlockSpec((tr, W), lambda i: (i, 0)),
        compiler_params=pltpu.CompilerParams(
            dimension_semantics=("parallel",)),        # shard tiles on v7x's 2 TCs
    )(xp, scale, phase, w1_bd, b1_w, w2_bd, b2_w)

    # Un-pack: (R_pad, W) -> (R*P, D) is a free row-major reshape.
    return out[:R].reshape(R * P, D)[:B]


def make_params(key, embed_dim=64, max_freq=10000.0):
    half = embed_dim // 2
    # freqs = exp(linspace(log(1), log(max_freq), half)) -- non-trainable buffer
    freqs = jnp.exp(jnp.linspace(math.log(1.0), math.log(max_freq), half)).astype(jnp.float32)

    k1, k2, k3, k4 = jax.random.split(key, 4)
    bound = 1.0 / math.sqrt(embed_dim)  # PyTorch Linear default init range
    # Weights stored as (in, out) == transpose of PyTorch's (out, in).
    w1 = jax.random.uniform(k1, (embed_dim, embed_dim), jnp.float32, -bound, bound)
    b1 = jax.random.uniform(k2, (embed_dim,), jnp.float32, -bound, bound)
    w2 = jax.random.uniform(k3, (embed_dim, embed_dim), jnp.float32, -bound, bound)
    b2 = jax.random.uniform(k4, (embed_dim,), jnp.float32, -bound, bound)
    return freqs, w1, b1, w2, b2


def reference(noise_level, freqs, w1, b1, w2, b2):
    args = noise_level.astype(jnp.float32) * freqs[None, :]
    emb = jnp.concatenate([jnp.sin(args), jnp.cos(args)], axis=-1)
    h = emb @ w1 + b1[None, :]
    h = 0.5 * h * (1.0 + jax.lax.erf(h / jnp.sqrt(2.0)))
    return h @ w2 + b2[None, :]


if __name__ == "__main__":
    embed_dim = 64

    key = jax.random.PRNGKey(0)
    kp, kx = jax.random.split(key)
    freqs, w1, b1, w2, b2 = make_params(kp, embed_dim=embed_dim)

    # B=8 (even, fully packed) and B=5 (odd, exercises pack/pad + slice-off).
    for B in (8, 5):
        noise_level = jax.random.uniform(jax.random.fold_in(kx, B), (B, 1), jnp.float32)
        out = jax.block_until_ready(
            sinusoidal_noise_embedding(noise_level, freqs, w1, b1, w2, b2))
        ref = reference(noise_level, freqs, w1, b1, w2, b2)
        assert out.shape == (B, embed_dim), out.shape
        err = float(jnp.max(jnp.abs(out - ref)))
        assert jnp.allclose(out, ref, atol=1e-4, rtol=1e-4), err

    print("KERNEL_OK")
</pallas_src>

<mosaic_0001>
module attributes {stable_mosaic.version = 11 : i64} {
  func.func @_noise_embed_kernel(%arg0: i32, %arg1: memref<4x2xf32, #tpu.memory_space<vmem>>, %arg2: memref<2x128xf32, #tpu.memory_space<vmem>>, %arg3: memref<1x128xf32, #tpu.memory_space<vmem>>, %arg4: memref<128x128xf32, #tpu.memory_space<vmem>>, %arg5: memref<1x128xf32, #tpu.memory_space<vmem>>, %arg6: memref<128x128xf32, #tpu.memory_space<vmem>>, %arg7: memref<1x128xf32, #tpu.memory_space<vmem>>, %arg8: memref<4x128xf32, #tpu.memory_space<vmem>>) attributes {dimension_semantics = [#tpu.dimension_semantics<parallel>], iteration_bounds = array<i64: 1>, scalar_prefetch = 0 : i64, scratch_operands = 0 : i64, tpu.core_type = #tpu.core_type<tc>, window_params = [{transform_indices = @transform_0, window_bounds = array<i64: 4, 2>}, {pipeline_mode = #tpu.pipeline_mode<synchronous>, transform_indices = @transform_1, window_bounds = array<i64: 2, 128>}, {pipeline_mode = #tpu.pipeline_mode<synchronous>, transform_indices = @transform_2, window_bounds = array<i64: 1, 128>}, {pipeline_mode = #tpu.pipeline_mode<synchronous>, transform_indices = @transform_3, window_bounds = array<i64: 128, 128>}, {pipeline_mode = #tpu.pipeline_mode<synchronous>, transform_indices = @transform_4, window_bounds = array<i64: 1, 128>}, {pipeline_mode = #tpu.pipeline_mode<synchronous>, transform_indices = @transform_5, window_bounds = array<i64: 128, 128>}, {pipeline_mode = #tpu.pipeline_mode<synchronous>, transform_indices = @transform_6, window_bounds = array<i64: 1, 128>}, {transform_indices = @transform_7, window_bounds = array<i64: 4, 128>}]} {
    %c0 = arith.constant 0 : index
    %c0_0 = arith.constant 0 : index
    %0 = vector.load %arg1[%c0, %c0_0] : memref<4x2xf32, #tpu.memory_space<vmem>>, vector<4x2xf32>
    %c0_1 = arith.constant 0 : index
    %c0_2 = arith.constant 0 : index
    %1 = vector.load %arg2[%c0_1, %c0_2] : memref<2x128xf32, #tpu.memory_space<vmem>>, vector<2x128xf32>
    %cst = arith.constant dense<0.000000e+00> : vector<4x128xf32>
    %2 = tpu.matmul %0, %1, %cst {dimension_numbers = #tpu.dot_dimension_numbers<[1], [0], [0], [1], [0, 0, 1, 1], [], []>} : vector<4x2xf32>, vector<2x128xf32>, vector<4x128xf32> -> vector<4x128xf32>
    %c0_3 = arith.constant 0 : index
    %c0_4 = arith.constant 0 : index
    %3 = vector.load %arg3[%c0_3, %c0_4] : memref<1x128xf32, #tpu.memory_space<vmem>>, vector<1x128xf32>
    %4 = vector.broadcast %3 : vector<1x128xf32> to vector<4x128xf32>
    %5 = arith.addf %2, %4 : vector<4x128xf32>
    %6 = math.sin %5 : vector<4x128xf32>
    %c0_5 = arith.constant 0 : index
    %c0_6 = arith.constant 0 : index
    %7 = vector.load %arg4[%c0_5, %c0_6] : memref<128x128xf32, #tpu.memory_space<vmem>>, vector<128x128xf32>
    %cst_7 = arith.constant dense<0.000000e+00> : vector<4x128xf32>
    %8 = tpu.matmul %6, %7, %cst_7 {dimension_numbers = #tpu.dot_dimension_numbers<[1], [0], [0], [1], [0, 0, 1, 1], [], []>} : vector<4x128xf32>, vector<128x128xf32>, vector<4x128xf32> -> vector<4x128xf32>
    %c0_8 = arith.constant 0 : index
    %c0_9 = arith.constant 0 : index
    %9 = vector.load %arg5[%c0_8, %c0_9] : memref<1x128xf32, #tpu.memory_space<vmem>>, vector<1x128xf32>
    %10 = vector.broadcast %9 : vector<1x128xf32> to vector<4x128xf32>
    %11 = arith.addf %8, %10 : vector<4x128xf32>
    %cst_10 = arith.constant 5.000000e-01 : f32
    %12 = vector.broadcast %cst_10 : f32 to vector<4x128xf32>
    %13 = arith.mulf %12, %11 : vector<4x128xf32>
    %cst_11 = arith.constant 0.707106769 : f32
    %14 = vector.broadcast %cst_11 : f32 to vector<4x128xf32>
    %15 = arith.mulf %11, %14 : vector<4x128xf32>
    %16 = math.erf %15 : vector<4x128xf32>
    %cst_12 = arith.constant 1.000000e+00 : f32
    %17 = vector.broadcast %cst_12 : f32 to vector<4x128xf32>
    %18 = arith.addf %17, %16 : vector<4x128xf32>
    %19 = arith.mulf %13, %18 : vector<4x128xf32>
    %c0_13 = arith.constant 0 : index
    %c0_14 = arith.constant 0 : index
    %20 = vector.load %arg6[%c0_13, %c0_14] : memref<128x128xf32, #tpu.memory_space<vmem>>, vector<128x128xf32>
    %cst_15 = arith.constant dense<0.000000e+00> : vector<4x128xf32>
    %21 = tpu.matmul %19, %20, %cst_15 {dimension_numbers = #tpu.dot_dimension_numbers<[1], [0], [0], [1], [0, 0, 1, 1], [], []>} : vector<4x128xf32>, vector<128x128xf32>, vector<4x128xf32> -> vector<4x128xf32>
    %c0_16 = arith.constant 0 : index
    %c0_17 = arith.constant 0 : index
    %22 = vector.load %arg7[%c0_16, %c0_17] : memref<1x128xf32, #tpu.memory_space<vmem>>, vector<1x128xf32>
    %23 = vector.broadcast %22 : vector<1x128xf32> to vector<4x128xf32>
    %24 = arith.addf %21, %23 : vector<4x128xf32>
    %c0_18 = arith.constant 0 : index
    %c0_19 = arith.constant 0 : index
    %25 = vector.load %arg8[%c0_18, %c0_19] : memref<4x128xf32, #tpu.memory_space<vmem>>, vector<4x128xf32>
    tpu.vector_store %arg8[%c0_18, %c0_19], %24 {strides = array<i32>} : memref<4x128xf32, #tpu.memory_space<vmem>>, vector<4x128xf32>,
    return
  }
  func.func @transform_0(%arg0: i32) -> (i32, i32) {
    %c0_i32 = arith.constant 0 : i32
    %c0_i32_0 = arith.constant 0 : i32
    return %arg0, %c0_i32 : i32, i32
  }
  func.func @transform_1(%arg0: i32) -> (i32, i32) {
    %c0_i32 = arith.constant 0 : i32
    %c0_i32_0 = arith.constant 0 : i32
    %c0_i32_1 = arith.constant 0 : i32
    return %c0_i32, %c0_i32_0 : i32, i32
  }
  func.func @transform_2(%arg0: i32) -> (i32, i32) {
    %c0_i32 = arith.constant 0 : i32
    %c0_i32_0 = arith.constant 0 : i32
    %c0_i32_1 = arith.constant 0 : i32
    return %c0_i32, %c0_i32_0 : i32, i32
  }
  func.func @transform_3(%arg0: i32) -> (i32, i32) {
    %c0_i32 = arith.constant 0 : i32
    %c0_i32_0 = arith.constant 0 : i32
    %c0_i32_1 = arith.constant 0 : i32
    return %c0_i32, %c0_i32_0 : i32, i32
  }
  func.func @transform_4(%arg0: i32) -> (i32, i32) {
    %c0_i32 = arith.constant 0 : i32
    %c0_i32_0 = arith.constant 0 : i32
    %c0_i32_1 = arith.constant 0 : i32
    return %c0_i32, %c0_i32_0 : i32, i32
  }
  func.func @transform_5(%arg0: i32) -> (i32, i32) {
    %c0_i32 = arith.constant 0 : i32
    %c0_i32_0 = arith.constant 0 : i32
    %c0_i32_1 = arith.constant 0 : i32
    return %c0_i32, %c0_i32_0 : i32, i32
  }
  func.func @transform_6(%arg0: i32) -> (i32, i32) {
    %c0_i32 = arith.constant 0 : i32
    %c0_i32_0 = arith.constant 0 : i32
    %c0_i32_1 = arith.constant 0 : i32
    return %c0_i32, %c0_i32_0 : i32, i32
  }
  func.func @transform_7(%arg0: i32) -> (i32, i32) {
    %c0_i32 = arith.constant 0 : i32
    %c0_i32_0 = arith.constant 0 : i32
    return %arg0, %c0_i32 : i32, i32
  }
}

</mosaic_0001>

<llo_original>
// kernel: tpu_custom_call.1
$region0: #{tpu_custom_call.1}
  #allocation0 [shape = 'u32[]', space=smem, size = 0x4, offset = 0x4, fixed_abs, tag = 'smem constant byte address 0x4 - core index']
  #allocation1 [shape = 'u32[144,128]{1,0:T(1,128)}', space=vmem, size = 0x12000, scoped, tag = 'internal scratch']
  %s0 = inlined_call_operand.vmem [shape: f32[4,2], index: 0, kind: input, shape index: {}]
  %s1 = inlined_call_operand.vmem [shape: f32[2,128], index: 1, kind: input, shape index: {}]
  %s2 = inlined_call_operand.vmem [shape: f32[1,128], index: 2, kind: input, shape index: {}]
  %s3 = inlined_call_operand.hbm [shape: f32[128,128], index: 3, kind: input, shape index: {}]
  %s4 = inlined_call_operand.vmem [shape: f32[1,128], index: 4, kind: input, shape index: {}]
  %s5 = inlined_call_operand.hbm [shape: f32[128,128], index: 5, kind: input, shape index: {}]
  %s6 = inlined_call_operand.vmem [shape: f32[1,128], index: 6, kind: input, shape index: {}]
  %s7 = inlined_call_operand.hbm [shape: f32[4,128], index: 7, kind: output, shape index: {}]
  %s8 = sld [smem:[#allocation0]]
  $region46: #{tpu_custom_call.1} parent=0
    _
  %s10 = ssub.s32 1, %s8
  %s11 = scalar_select 0, %s10, %s8
  $region1: #{tpu_custom_call.1} parent=0
    #allocation2 [shape = 'u8[65536]{0}', space=vmem, size = 0x10000, scoped, tag = 'input window, operand 3, single buffered']
    #allocation3 [shape = 's32[1]{0}', space=sflag, size = 0x4, scoped, tag = 'scoped memory for tpu_custom_call.1']
    #allocation4 [shape = 's32[1]{0}', space=sflag, size = 0x4, scoped, tag = 'scoped memory for tpu_custom_call.1']
    #allocation5 [shape = 'u8[65536]{0}', space=vmem, size = 0x10000, scoped, tag = 'input window, operand 5, single buffered']
    #allocation6 [shape = 's32[1]{0}', space=sflag, size = 0x4, scoped, tag = 'scoped memory for tpu_custom_call.1']
    #allocation7 [shape = 'u8[2048]{0}', space=vmem, size = 0x800, scoped, tag = 'output window, operand 0, single buffered']
    %12 = vsyncpa [#allocation3], 0
    %13 = vsyncpa [#allocation6], 0
    %14 = vsyncpa [#allocation4], 0
    // Predicated region
    $region2: #{tpu_custom_call.1} parent=1 // pred_check
      _
    $region3: #{tpu_custom_call.1} parent=1 // pred_check_branch
      %16 = sbr.rel (0) target = $region5
    $region4: #{tpu_custom_call.1} parent=1 // pred_region
      _
    $region5: #{tpu_custom_call.1} parent=1 // pred_fallthru
      _
    // Predicated region
    $region6: #{tpu_custom_call.1} parent=1 // pred_check
      _
    $region7: #{tpu_custom_call.1} parent=1 // pred_check_branch
      %18 = sbr.rel (0) target = $region9
    $region8: #{tpu_custom_call.1} parent=1 // pred_region
      _
    $region9: #{tpu_custom_call.1} parent=1 // pred_fallthru
      _
    // Predicated region
    $region10: #{tpu_custom_call.1} parent=1 // pred_check
      _
    $region11: #{tpu_custom_call.1} parent=1 // pred_check_branch
      %20 = sbr.rel (0) target = $region13
    $region12: #{tpu_custom_call.1} parent=1 // pred_region
      _
    $region13: #{tpu_custom_call.1} parent=1 // pred_fallthru
      _
    // Predicated region
    $region14: #{tpu_custom_call.1} parent=1 // pred_check
      _
    $region15: #{tpu_custom_call.1} parent=1 // pred_check_branch
      %22 = sbr.rel (0) target = $region17
    $region16: #{tpu_custom_call.1} parent=1 // pred_region
      %s24 = ssub.s32 2048, 2048
      %25 = vsyncadd [#allocation3], %s24
      %s26 = sshll.u32 [#allocation2], 4
      %s27 = int_to_ptr.vmem [resolvable:$true] %s26
      %32 = dma.hbm_to_vmem [thread:$0]  %s3, 2048, %s27, [#allocation3], 128, 128, 8
    $region17: #{tpu_custom_call.1} parent=1 // pred_fallthru
      _
    // Predicated region
    $region18: #{tpu_custom_call.1} parent=1 // pred_check
      _
    $region19: #{tpu_custom_call.1} parent=1 // pred_check_branch
      %34 = sbr.rel (0) target = $region21
    $region20: #{tpu_custom_call.1} parent=1 // pred_region
      _
    $region21: #{tpu_custom_call.1} parent=1 // pred_fallthru
      _
    // Predicated region
    $region22: #{tpu_custom_call.1} parent=1 // pred_check
      _
    $region23: #{tpu_custom_call.1} parent=1 // pred_check_branch
      %36 = sbr.rel (0) target = $region25
    $region24: #{tpu_custom_call.1} parent=1 // pred_region
      %s38 = ssub.s32 2048, 2048
      %39 = vsyncadd [#allocation6], %s38
      %s40 = sshll.u32 [#allocation5], 4
      %s41 = int_to_ptr.vmem [resolvable:$true] %s40
      %46 = dma.hbm_to_vmem [thread:$0]  %s5, 2048, %s41, [#allocation6], 128, 128, 8
    $region25: #{tpu_custom_call.1} parent=1 // pred_fallthru
      _
    // Predicated region
    $region26: #{tpu_custom_call.1} parent=1 // pred_check
      _
    $region27: #{tpu_custom_call.1} parent=1 // pred_check_branch
      %48 = sbr.rel (0) target = $region29
    $region28: #{tpu_custom_call.1} parent=1 // pred_region
      _
    $region29: #{tpu_custom_call.1} parent=1 // pred_fallthru
      _
    // Predicated region
    $region30: #{tpu_custom_call.1} parent=1 // pred_check
      _
    $region31: #{tpu_custom_call.1} parent=1 // pred_check_branch
      %50 = sbr.rel (0) target = $region33
    $region32: #{tpu_custom_call.1} parent=1 // pred_region
      %51 = dma.done [#allocation3], 2048
    $region33: #{tpu_custom_call.1} parent=1 // pred_fallthru
      _
    // Predicated region
    $region34: #{tpu_custom_call.1} parent=1 // pred_check
      _
    $region35: #{tpu_custom_call.1} parent=1 // pred_check_branch
      %53 = sbr.rel (0) target = $region37
    $region36: #{tpu_custom_call.1} parent=1 // pred_region
      %54 = dma.done [#allocation6], 2048
    $region37: #{tpu_custom_call.1} parent=1 // pred_fallthru
      _
    %v55 = vld [vmem:[%s0] sm:$0xf]
    %v56 = vld [vmem:[%s1] sm:$0x3]
    %v57 = vld [vmem:[%s2] sm:$0x1]
    %v59 = vlaneseq
    %v60 = vshrl.u32 %v59, 7
    %v61 = vsub.s32 0, %v60
    %v62 = vrot.slane %v57, %v61
    %vm64 = vcmask 15360
    %v66 = vsel %vm64, %v55, 0
    %vm68 = vcmask 1041408
    %v70 = vsel %vm68, %v56, 0
    %72 = vmatprep.subr.mxu0 0.0
    %73 = vmatpush1.msra.mxu0 0.0
    %74 = vmatprep.subr.mxu0 0.0
    %75 = vmatpush1.msra.mxu0 0.0
    %76 = vmatprep.subr.mxu0 0.0
    %77 = vmatpush1.msra.mxu0 0.0
    %78 = vmatprep.subr.mxu0 0.0
    %79 = vmatpush1.msra.mxu0 0.0
    %80 = vmatprep.subr.mxu0 0.0
    %81 = vmatpush1.msra.mxu0 0.0
    %82 = vmatprep.subr.mxu0 0.0
    %83 = vmatpush1.msra.mxu0 0.0
    %84 = vmatprep.subr.mxu0 0.0
    %85 = vmatpush1.msra.mxu0 0.0
    %86 = vmatprep.subr.mxu0 0.0
    %87 = vmatpush1.msra.mxu0 0.0
    %88 = vmatprep.subr.mxu0 0.0
    %89 = vmatpush1.msra.mxu0 0.0
    %90 = vmatprep.subr.mxu0 0.0
    %91 = vmatpush1.msra.mxu0 0.0
    %92 = vmatprep.subr.mxu0 0.0
    %93 = vmatpush1.msra.mxu0 0.0
    %94 = vmatprep.subr.mxu0 0.0
    %95 = vmatpush1.msra.mxu0 0.0
    %96 = vmatprep.subr.mxu0 0.0
    %97 = vmatpush1.msra.mxu0 0.0
    %98 = vmatprep.subr.mxu0 0.0
    %99 = vmatpush1.msra.mxu0 0.0
    %100 = vmatprep.subr.mxu0 0.0
    %101 = vmatpush1.msra.mxu0 0.0
    %102 = vmatprep.subr.mxu0 0.0
    %103 = vmatpush1.msra.mxu0 %v70
    %104 = vmatprep.subr.mxu0 0.0
    %105 = vmatpush2.msra.mxu0 0.0
    %106 = vmatprep.subr.mxu0 0.0
    %107 = vmatpush2.msra.mxu0 0.0
    %108 = vmatprep.subr.mxu0 0.0
    %109 = vmatpush2.msra.mxu0 0.0
    %110 = vmatprep.subr.mxu0 0.0
    %111 = vmatpush2.msra.mxu0 0.0
    %112 = vmatprep.subr.mxu0 0.0
    %113 = vmatpush2.msra.mxu0 0.0
    %114 = vmatprep.subr.mxu0 0.0
    %115 = vmatpush2.msra.mxu0 0.0
    %116 = vmatprep.subr.mxu0 0.0
    %117 = vmatpush2.msra.mxu0 0.0
    %118 = vmatprep.subr.mxu0 0.0
    %119 = vmatpush2.msra.mxu0 0.0
    %120 = vmatprep.subr.mxu0 0.0
    %121 = vmatpush2.msra.mxu0 0.0
    %122 = vmatprep.subr.mxu0 0.0
    %123 = vmatpush2.msra.mxu0 0.0
    %124 = vmatprep.subr.mxu0 0.0
    %125 = vmatpush2.msra.mxu0 0.0
    %126 = vmatprep.subr.mxu0 0.0
    %127 = vmatpush2.msra.mxu0 0.0
    %128 = vmatprep.subr.mxu0 0.0
    %129 = vmatpush2.msra.mxu0 0.0
    %130 = vmatprep.subr.mxu0 0.0
    %131 = vmatpush2.msra.mxu0 0.0
    %132 = vmatprep.subr.mxu0 0.0
    %133 = vmatpush2.msra.mxu0 0.0
    %134 = vmatprep.subr.mxu0 0.0
    %135 = vmatpush2.msra.mxu0 0.0
    %136 = vmatprep.mubr.f32.mxu0 0.0
    %137 = vmatmul.mubr.f32.gmra.mxu0 %v66
    %v138 = vpop.f32.mrf.mxu0
    %v139 = vadd.f32 %v62, %v138
    %v140 = vpop.f32.mrf.mxu0
    %141 = vdwg.mxu0
    %v142 = vand.u32 2147483647, %v139
    %vm143 = vcmp.le.f32.partialorder %v142, 0.7853982
    %vm144 = vcmp.lt.s32.totalorder %v139, 0
    %v145 = vand.u32 %v139, 2139095040
    %v146 = vshrl.u32 %v145, 23
    %v147 = vsub.s32 %v146, 127
    %v148 = vand.u32 2147483647, %v139
    %v149 = vand.u32 %v148, 8388607
    %v150 = vor.u32 %v149, 8388608
    %v151 = vsub.s32 0, %v150
    %v152 = vadd.s32 %v147, 1
    %vm153 = vcmp.gt.s32.totalorder %v152, 0
    %v154 = vsel %vm153, %v152, 0
    %v155 = vshrl.u32 %v154, 5
    %v156 = vand.u32 %v154, 31
    %v157 = vsub.s32 32, %v156
    %v158 = vshrl.u32 683565275, %v157
    %v159 = vshll.u32 683565275, %v156
    %v160 = vshrl.u32 2475754826, %v157
    %v161 = vor.u32 %v159, %v160
    %v162 = vshll.u32 2475754826, %v156
    %v163 = vshrl.u32 2131351028, %v157
    %v164 = vor.u32 %v162, %v163
    %v165 = vshll.u32 2131351028, %v156
    %v166 = vshrl.u32 2102212464, %v157
    %v167 = vor.u32 %v165, %v166
    %v168 = vshll.u32 2102212464, %v156
    %v169 = vshrl.u32 920167782, %v157
    %v170 = vor.u32 %v168, %v169
    %v171 = vshll.u32 920167782, %v156
    %v172 = vshrl.u32 1326507024, %v157
    %v173 = vor.u32 %v171, %v172
    %vm174 = vcmp.lt.s32.totalorder %v155, 1
    %vm175 = vcmp.lt.s32.totalorder %v155, 2
    %vm176 = vcmp.lt.s32.totalorder %v155, 3
    %vm177 = vcmp.lt.s32.totalorder %v155, 4
    %v178 = vsel %vm174, %v158, %v161
    %v179 = vsel %vm177, %v167, 2102212464
    %v180 = vsel %vm176, %v164, %v179
    %v181 = vsel %vm175, %v178, %v180
    %v182 = vsel %vm174, %v161, %v164
    %v183 = vsel %vm177, %v170, 920167782
    %v184 = vsel %vm176, %v167, %v183
    %v185 = vsel %vm175, %v182, %v184
    %v186 = vsel %vm174, %v164, %v167
    %v187 = vsel %vm177, %v173, 1326507024
    %v188 = vsel %vm176, %v170, %v187
    %v189 = vsel %vm175, %v186, %v188
    %v190 = vshll.u32 %v150, 8
    %v191 = vmul.u32.u64.compose %v190, %v189
    %v192 = vextract.low.u32 %v191
    %v193 = vextract.high.u32 %v191
    %v194 = vmul.u32.u64.compose %v190, %v185
    %v195 = vextract.low.u32 %v194
    %v196 = vextract.high.u32 %v194
    %v197 = vmul.u32 %v190, %v181
    %v198 = vadd.s32 %v193, %v195
    %vm199 = vc.u32 %v193, %v195
    %v200 = vadd.s32 %v196, 1
    %v201 = vsel %vm199, %v200, %v196
    %v202 = vadd.s32 %v197, %v201
    %v203 = vadd.s32 %v202, 536870912
    %v204 = vshrl.u32 %v203, 30
    %v205 = vshll.u32 %v204, 30
    %v206 = vsub.s32 %v202, %v205
    %vm207 = vcmp.lt.s32.totalorder %v206, 0
    %v208 = vsub.s32 0, %v206
    %v209 = vsel %vm207, %v208, %v206
    %v210 = vclz %v209
    %v211 = vsub.s32 %v210, 2
    %vm212 = vcmp.gt.s32.totalorder 0, %v211
    %v213 = vsel %vm212, 0, %v211
    %v214 = vsub.s32 32, %v213
    %v215 = vshll.u32 %v206, %v213
    %v216 = vshrl.u32 %v198, %v214
    %v217 = vor.u32 %v215, %v216
    %v218 = vsub.s32 4294967266, %v213
    %v219 = vadd.s32 %v218, 127
    %v220 = vshll.u32 %v219, 23
    %v221 = vor.u32 4788187, %v220
    %v222 = vand.u32 2147483647, %v221
    %v224 = vcvt.s32.f32 %v217
    %v225 = vmul.f32 %v224, %v222
    %v226 = vxor.u32 %v225, 2147483648
    %v227 = vsel %vm144, %v226, %v225
    %v228 = vsub.s32 4, %v204
    %v229 = vsel %vm144, %v228, %v204
    %v230 = vsel %vm143, %v139, %v227
    %v231 = vsel %vm143, 0, %v229
    %v232 = vcosq.f32.pop %v230
    %v233 = vsinq.f32.pop %v230
    %vm234 = vweird.f32 %v139
    %v235 = vadd.s32 %v231, 3
    %v236 = vand.u32 %v235, 3
    %vm237 = vcmp.lt.s32.totalorder %v236, 2
    %vm238 = vcmp.eq.s32.totalorder %v236, 0
    %v239 = vxor.u32 %v233, 2147483648
    %v240 = vsel %vm238, %v232, %v239
    %vm241 = vcmp.eq.s32.totalorder %v236, 2
    %v242 = vxor.u32 %v232, 2147483648
    %v243 = vsel %vm241, %v242, %v233
    %v244 = vsel %vm237, %v240, %v243
    %v245 = vsel %vm234, nan, %v244
    %v246 = vld [vmem:[#allocation2] sm:$0xff]
    %v247 = vld [vmem:[#allocation2 + $0x8] sm:$0xff]
    %v248 = vld [vmem:[#allocation2 + $0x10] sm:$0xff]
    %v249 = vld [vmem:[#allocation2 + $0x18] sm:$0xff]
    %v250 = vld [vmem:[#allocation2 + $0x20] sm:$0xff]
    %v251 = vld [vmem:[#allocation2 + $0x28] sm:$0xff]
    %v252 = vld [vmem:[#allocation2 + $0x30] sm:$0xff]
    %v253 = vld [vmem:[#allocation2 + $0x38] sm:$0xff]
    %v254 = vld [vmem:[#allocation2 + $0x40] sm:$0xff]
    %v255 = vld [vmem:[#allocation2 + $0x48] sm:$0xff]
    %v256 = vld [vmem:[#allocation2 + $0x50] sm:$0xff]
    %v257 = vld [vmem:[#allocation2 + $0x58] sm:$0xff]
    %v258 = vld [vmem:[#allocation2 + $0x60] sm:$0xff]
    %v259 = vld [vmem:[#allocation2 + $0x68] sm:$0xff]
    %v260 = vld [vmem:[#allocation2 + $0x70] sm:$0xff]
    %v261 = vld [vmem:[#allocation2 + $0x78] sm:$0xff]
    %v262 = vld [vmem:[%s4] sm:$0x1]
    %v264 = vlaneseq
    %v265 = vshrl.u32 %v264, 7
    %v266 = vsub.s32 0, %v265
    %v267 = vrot.slane %v262, %v266
    %269 = vmatprep.subr.mxu0 0.0
    %270 = vmatpush1.msra.mxu0 %v261
    %271 = vmatprep.subr.mxu0 0.0
    %272 = vmatpush1.msra.mxu0 %v260
    %273 = vmatprep.subr.mxu0 0.0
    %274 = vmatpush1.msra.mxu0 %v259
    %275 = vmatprep.subr.mxu0 0.0
    %276 = vmatpush1.msra.mxu0 %v258
    %277 = vmatprep.subr.mxu0 0.0
    %278 = vmatpush1.msra.mxu0 %v257
    %279 = vmatprep.subr.mxu0 0.0
    %280 = vmatpush1.msra.mxu0 %v256
    %281 = vmatprep.subr.mxu0 0.0
    %282 = vmatpush1.msra.mxu0 %v255
    %283 = vmatprep.subr.mxu0 0.0
    %284 = vmatpush1.msra.mxu0 %v254
    %285 = vmatprep.subr.mxu0 0.0
    %286 = vmatpush1.msra.mxu0 %v253
    %287 = vmatprep.subr.mxu0 0.0
    %288 = vmatpush1.msra.mxu0 %v252
    %289 = vmatprep.subr.mxu0 0.0
    %290 = vmatpush1.msra.mxu0 %v251
    %291 = vmatprep.subr.mxu0 0.0
    %292 = vmatpush1.msra.mxu0 %v250
    %293 = vmatprep.subr.mxu0 0.0
    %294 = vmatpush1.msra.mxu0 %v249
    %295 = vmatprep.subr.mxu0 0.0
    %296 = vmatpush1.msra.mxu0 %v248
    %297 = vmatprep.subr.mxu0 0.0
    %298 = vmatpush1.msra.mxu0 %v247
    %299 = vmatprep.subr.mxu0 0.0
    %300 = vmatpush1.msra.mxu0 %v246
    %301 = vmatprep.subr.mxu0 0.0
    %302 = vmatpush2.msra.mxu0 0.0
    %303 = vmatprep.subr.mxu0 0.0
    %304 = vmatpush2.msra.mxu0 0.0
    %305 = vmatprep.subr.mxu0 0.0
    %306 = vmatpush2.msra.mxu0 0.0
    %307 = vmatprep.subr.mxu0 0.0
    %308 = vmatpush2.msra.mxu0 0.0
    %309 = vmatprep.subr.mxu0 0.0
    %310 = vmatpush2.msra.mxu0 0.0
    %311 = vmatprep.subr.mxu0 0.0
    %312 = vmatpush2.msra.mxu0 0.0
    %313 = vmatprep.subr.mxu0 0.0
    %314 = vmatpush2.msra.mxu0 0.0
    %315 = vmatprep.subr.mxu0 0.0
    %316 = vmatpush2.msra.mxu0 0.0
    %317 = vmatprep.subr.mxu0 0.0
    %318 = vmatpush2.msra.mxu0 0.0
    %319 = vmatprep.subr.mxu0 0.0
    %320 = vmatpush2.msra.mxu0 0.0
    %321 = vmatprep.subr.mxu0 0.0
    %322 = vmatpush2.msra.mxu0 0.0
    %323 = vmatprep.subr.mxu0 0.0
    %324 = vmatpush2.msra.mxu0 0.0
    %325 = vmatprep.subr.mxu0 0.0
    %326 = vmatpush2.msra.mxu0 0.0
    %327 = vmatprep.subr.mxu0 0.0
    %328 = vmatpush2.msra.mxu0 0.0
    %329 = vmatprep.subr.mxu0 0.0
    %330 = vmatpush2.msra.mxu0 0.0
    %331 = vmatprep.subr.mxu0 0.0
    %332 = vmatpush2.msra.mxu0 0.0
    %333 = vmatprep.mubr.f32.mxu0 0.0
    %334 = vmatmul.mubr.f32.gmra.mxu0 %v245
    %v335 = vpop.f32.mrf.mxu0
    %v336 = vadd.f32 %v267, %v335
    %v337 = vpop.f32.mrf.mxu0
    %338 = vdwg.mxu0
    %v339 = vmul.f32 %v336, 0.5
    %v340 = vmul.f32 %v336, 0.70710677
    %v341 = verf.f32.pop %v340
    %v342 = vadd.f32 %v341, 1.0
    %v343 = vmul.f32 %v339, %v342
    %v344 = vld [vmem:[#allocation5] sm:$0xff]
    %v345 = vld [vmem:[#allocation5 + $0x8] sm:$0xff]
    %v346 = vld [vmem:[#allocation5 + $0x10] sm:$0xff]
    %v347 = vld [vmem:[#allocation5 + $0x18] sm:$0xff]
    %v348 = vld [vmem:[#allocation5 + $0x20] sm:$0xff]
    %v349 = vld [vmem:[#allocation5 + $0x28] sm:$0xff]
    %v350 = vld [vmem:[#allocation5 + $0x30] sm:$0xff]
    %v351 = vld [vmem:[#allocation5 + $0x38] sm:$0xff]
    %v352 = vld [vmem:[#allocation5 + $0x40] sm:$0xff]
    %v353 = vld [vmem:[#allocation5 + $0x48] sm:$0xff]
    %v354 = vld [vmem:[#allocation5 + $0x50] sm:$0xff]
    %v355 = vld [vmem:[#allocation5 + $0x58] sm:$0xff]
    %v356 = vld [vmem:[#allocation5 + $0x60] sm:$0xff]
    %v357 = vld [vmem:[#allocation5 + $0x68] sm:$0xff]
    %v358 = vld [vmem:[#allocation5 + $0x70] sm:$0xff]
    %v359 = vld [vmem:[#allocation5 + $0x78] sm:$0xff]
    %v360 = vld [vmem:[%s6] sm:$0x1]
    %v362 = vlaneseq
    %v363 = vshrl.u32 %v362, 7
    %v364 = vsub.s32 0, %v363
    %v365 = vrot.slane %v360, %v364
    %367 = vmatprep.subr.mxu0 0.0
    %368 = vmatpush1.msra.mxu0 %v359
    %369 = vmatprep.subr.mxu0 0.0
    %370 = vmatpush1.msra.mxu0 %v358
    %371 = vmatprep.subr.mxu0 0.0
    %372 = vmatpush1.msra.mxu0 %v357
    %373 = vmatprep.subr.mxu0 0.0
    %374 = vmatpush1.msra.mxu0 %v356
    %375 = vmatprep.subr.mxu0 0.0
    %376 = vmatpush1.msra.mxu0 %v355
    %377 = vmatprep.subr.mxu0 0.0
    %378 = vmatpush1.msra.mxu0 %v354
    %379 = vmatprep.subr.mxu0 0.0
    %380 = vmatpush1.msra.mxu0 %v353
    %381 = vmatprep.subr.mxu0 0.0
    %382 = vmatpush1.msra.mxu0 %v352
    %383 = vmatprep.subr.mxu0 0.0
    %384 = vmatpush1.msra.mxu0 %v351
    %385 = vmatprep.subr.mxu0 0.0
    %386 = vmatpush1.msra.mxu0 %v350
    %387 = vmatprep.subr.mxu0 0.0
    %388 = vmatpush1.msra.mxu0 %v349
    %389 = vmatprep.subr.mxu0 0.0
    %390 = vmatpush1.msra.mxu0 %v348
    %391 = vmatprep.subr.mxu0 0.0
    %392 = vmatpush1.msra.mxu0 %v347
    %393 = vmatprep.subr.mxu0 0.0
    %394 = vmatpush1.msra.mxu0 %v346
    %395 = vmatprep.subr.mxu0 0.0
    %396 = vmatpush1.msra.mxu0 %v345
    %397 = vmatprep.subr.mxu0 0.0
    %398 = vmatpush1.msra.mxu0 %v344
    %399 = vmatprep.subr.mxu0 0.0
    %400 = vmatpush2.msra.mxu0 0.0
    %401 = vmatprep.subr.mxu0 0.0
    %402 = vmatpush2.msra.mxu0 0.0
    %403 = vmatprep.subr.mxu0 0.0
    %404 = vmatpush2.msra.mxu0 0.0
    %405 = vmatprep.subr.mxu0 0.0
    %406 = vmatpush2.msra.mxu0 0.0
    %407 = vmatprep.subr.mxu0 0.0
    %408 = vmatpush2.msra.mxu0 0.0
    %409 = vmatprep.subr.mxu0 0.0
    %410 = vmatpush2.msra.mxu0 0.0
    %411 = vmatprep.subr.mxu0 0.0
    %412 = vmatpush2.msra.mxu0 0.0
    %413 = vmatprep.subr.mxu0 0.0
    %414 = vmatpush2.msra.mxu0 0.0
    %415 = vmatprep.subr.mxu0 0.0
    %416 = vmatpush2.msra.mxu0 0.0
    %417 = vmatprep.subr.mxu0 0.0
    %418 = vmatpush2.msra.mxu0 0.0
    %419 = vmatprep.subr.mxu0 0.0
    %420 = vmatpush2.msra.mxu0 0.0
    %421 = vmatprep.subr.mxu0 0.0
    %422 = vmatpush2.msra.mxu0 0.0
    %423 = vmatprep.subr.mxu0 0.0
    %424 = vmatpush2.msra.mxu0 0.0
    %425 = vmatprep.subr.mxu0 0.0
    %426 = vmatpush2.msra.mxu0 0.0
    %427 = vmatprep.subr.mxu0 0.0
    %428 = vmatpush2.msra.mxu0 0.0
    %429 = vmatprep.subr.mxu0 0.0
    %430 = vmatpush2.msra.mxu0 0.0
    %431 = vmatprep.mubr.f32.mxu0 0.0
    %432 = vmatmul.mubr.f32.gmra.mxu0 %v343
    %v433 = vpop.f32.mrf.mxu0
    %v434 = vadd.f32 %v365, %v433
    %v435 = vpop.f32.mrf.mxu0
    %436 = vdwg.mxu0
    %437 = vst [vmem:[#allocation7] sm:$0xf] %v434
    // Predicated region
    $region38: #{tpu_custom_call.1} parent=1 // pred_check
      _
    $region39: #{tpu_custom_call.1} parent=1 // pred_check_branch
      %439 = sbr.rel (0) target = $region41
    $region40: #{tpu_custom_call.1} parent=1 // pred_region
      %s441 = ssub.s32 64, 64
      %442 = vsyncadd [#allocation4], %s441
      %s444 = sshll.u32 [#allocation7], 4
      %s445 = int_to_ptr.vmem [resolvable:$true] %s444
      %447 = dma.vmem_to_hbm [thread:$0]  %s445, 64, %s7, [#allocation4]
    $region41: #{tpu_custom_call.1} parent=1 // pred_fallthru
      _
    // Predicated region
    $region42: #{tpu_custom_call.1} parent=1 // pred_check
      _
    $region43: #{tpu_custom_call.1} parent=1 // pred_check_branch
      %449 = sbr.rel (0) target = $region45
    $region44: #{tpu_custom_call.1} parent=1 // pred_region
      %450 = dma.done [#allocation4], 64
    $region45: #{tpu_custom_call.1} parent=1 // pred_fallthru
      _
    %451 = vsyncpa [#allocation3], 1
    %452 = vsyncpa [#allocation6], 1
    %453 = vsyncpa [#allocation4], 1

</llo_original>
